<compile_context>
chip_gen: v5e
topology: v5e:2x2
jax: 0.10.0
libtpu: 0.0.40
codegen_flags: <defaults>
</compile_context>

<pallas_src>
import functools

import jax
import jax.numpy as jnp
from jax.experimental import pallas as pl
from jax.experimental.pallas import tpu as pltpu

LANES = 128
SUB_ROWS = 64                          # rows per in-kernel sub-tile (8 vregs/input)
TARGET_BLOCK_BYTES = 4 * 1024 * 1024   # per input per pipeline buffer
SMALL_ROWS = 512                       # below this: single whole-block kernel
VMEM_LIMIT_BYTES = 32 * 1024 * 1024    # safe on v5e/v6e/v7x


def _round_up(a, m):
    return m * ((a + m - 1) // m)


def _iou_partials_kernel(x_ref, y_ref, o_ref, acc_i_ref, acc_t_ref, *,
                         block_rows, blocks_per_core, total_rows, whole_block):
    """Accumulate per-lane partial sums of x*y and x+y into (8,128) f32."""
    p = pl.program_id(0)            # core-parallel axis
    j = pl.program_id(1)            # streaming / reduction axis
    g = p * blocks_per_core + j     # logical block index (unclamped)

    @pl.when(j == 0)
    def _init():
        acc_i_ref[...] = jnp.zeros_like(acc_i_ref)
        acc_t_ref[...] = jnp.zeros_like(acc_t_ref)

    def accumulate(x, y):
        x = x.astype(jnp.float32)
        y = y.astype(jnp.float32)
        r = x.shape[0]
        # Tile-aligned fold (r,128) -> (8,128): pure VPU vreg adds.
        acc_i_ref[...] += (x * y).reshape(r // 8, 8, LANES).sum(axis=0)
        acc_t_ref[...] += (x + y).reshape(r // 8, 8, LANES).sum(axis=0)

    if whole_block:
        # Tiny-input path: block == whole (rows, 128) array.  The lane pad is
        # exact, so no masking is ever needed here.
        x = x_ref[...].astype(jnp.float32)
        y = y_ref[...].astype(jnp.float32)
        if block_rows % 8 == 0:
            accumulate(x, y)
        else:
            acc_i_ref[0:1, :] += jnp.sum(x * y, axis=0, keepdims=True)
            acc_t_ref[0:1, :] += jnp.sum(x + y, axis=0, keepdims=True)
    else:
        nsub = block_rows // SUB_ROWS   # static; block_rows % SUB_ROWS == 0

        # At most one block (the global tail) overhangs the logical end of the
        # data; only that block pays for the iota/compare/select mask.
        is_partial = (g + 1) * block_rows > total_rows

        @pl.when(jnp.logical_not(is_partial))
        def _full():
            def body(t, carry):
                r = pl.multiple_of(t * SUB_ROWS, SUB_ROWS)
                accumulate(x_ref[pl.ds(r, SUB_ROWS), :],
                           y_ref[pl.ds(r, SUB_ROWS), :])
                return carry
            jax.lax.fori_loop(0, nsub, body, 0)

        @pl.when(is_partial)
        def _tail():
            base = g * block_rows
            def body(t, carry):
                r = pl.multiple_of(t * SUB_ROWS, SUB_ROWS)
                row = base + r + jax.lax.broadcasted_iota(
                    jnp.int32, (SUB_ROWS, LANES), 0)
                valid = row < total_rows
                x = jnp.where(valid, x_ref[pl.ds(r, SUB_ROWS), :], 0)
                y = jnp.where(valid, y_ref[pl.ds(r, SUB_ROWS), :], 0)
                accumulate(x, y)
                return carry
            jax.lax.fori_loop(0, nsub, body, 0)

    @pl.when(j == pl.num_programs(1) - 1)
    def _finalize():
        o_ref[0, 0] = acc_i_ref[...]
        o_ref[0, 1] = acc_t_ref[...]


def iou_loss(inputs, targets, smooth=1.0, *, core_parallel=False):
    """Pallas TPU IoU loss matching PyTorch IoULoss.forward semantics.

    core_parallel=True requests explicit cross-TensorCore sharding of the
    leading grid axis (pltpu.CORE_PARALLEL) for multi-TC chips (v7x); the
    default plain "parallel" semantics are safe on every generation.
    """
    assert inputs.shape == targets.shape
    x = jnp.reshape(inputs, (-1,))
    y = jnp.reshape(targets, (-1,))
    n = x.shape[0]

    # Lane-align only (<=127 zero elements); zeros are neutral for both sums.
    pad = (-n) % LANES
    if pad:
        x = jnp.pad(x, (0, pad))
        y = jnp.pad(y, (0, pad))
    rows = (n + pad) // LANES
    x2 = x.reshape(rows, LANES)
    y2 = y.reshape(rows, LANES)

    itemsize = max(x2.dtype.itemsize, y2.dtype.itemsize)

    if rows <= SMALL_ROWS:
        # Single whole-array block; per-step overhead is irrelevant here.
        num_parallel = 1
        blocks_per_core = 1
        block_rows = rows
        whole_block = True
        dead_block_possible = False
        last_data_block = 0
    else:
        # Byte-sized blocks (bf16 gets 2x the rows of f32): ~4 MiB / input /
        # pipeline buffer -> ~16 MiB of double-buffered input VMEM total.
        target_rows = max(SUB_ROWS, TARGET_BLOCK_BYTES // (LANES * itemsize))
        num_parallel = 2                       # shard stream across TCs (v7x)
        n_blocks = max(num_parallel, pl.cdiv(rows, target_rows))
        n_blocks = num_parallel * pl.cdiv(n_blocks, num_parallel)
        # Spread rows across all blocks (multiple of SUB_ROWS) so the grid
        # covers the data exactly: no routinely duplicated / dead block.
        block_rows = _round_up(pl.cdiv(rows, n_blocks), SUB_ROWS)
        blocks_per_core = n_blocks // num_parallel
        whole_block = False
        # A fully-dead tail block is only possible for enormous, oddly-sized
        # inputs; emit the index-map clamp only then (it is fully masked).
        last_data_block = max(pl.cdiv(rows, block_rows) - 1, 0)
        dead_block_possible = (n_blocks - 1) * block_rows >= rows

    def in_index_map(p, j):
        g = p * blocks_per_core + j
        if dead_block_possible:
            g = jnp.minimum(g, last_data_block)   # keep the DMA in-bounds
        return (g, 0)

    kernel = functools.partial(
        _iou_partials_kernel,
        block_rows=block_rows,
        blocks_per_core=blocks_per_core,
        total_rows=rows,
        whole_block=whole_block,
    )

    if core_parallel:
        dim_sem = (pltpu.CORE_PARALLEL, pltpu.ARBITRARY)
    else:
        # Plain "parallel" is safe everywhere; on v7x, pass core_parallel=True
        # if profiling shows the grid is not actually sharded across the 2 TCs.
        dim_sem = ("parallel", "arbitrary")

    bytes_accessed = int(x2.size * x2.dtype.itemsize
                         + y2.size * y2.dtype.itemsize
                         + num_parallel * 2 * 8 * LANES * 4)

    partials = pl.pallas_call(
        kernel,
        out_shape=jax.ShapeDtypeStruct((num_parallel, 2, 8, LANES), jnp.float32),
        grid_spec=pltpu.PrefetchScalarGridSpec(
            num_scalar_prefetch=0,
            grid=(num_parallel, blocks_per_core),
            in_specs=[
                pl.BlockSpec((block_rows, LANES), in_index_map),
                pl.BlockSpec((block_rows, LANES), in_index_map),
            ],
            out_specs=pl.BlockSpec((1, 2, 8, LANES), lambda p, j: (p, 0, 0, 0)),
            scratch_shapes=[
                pltpu.VMEM((8, LANES), jnp.float32),   # intersection partials
                pltpu.VMEM((8, LANES), jnp.float32),   # total partials
            ],
        ),
        compiler_params=pltpu.CompilerParams(
            dimension_semantics=dim_sem,
            vmem_limit_bytes=VMEM_LIMIT_BYTES,
        ),
        cost_estimate=pl.CostEstimate(
            flops=4 * int(n), transcendentals=0, bytes_accessed=bytes_accessed),
    )(x2, y2)

    # Final cross-lane reduce + epilogue in plain JAX (tiny); keeps `smooth`
    # out of the kernel so changing it never recompiles the kernel.
    intersection = jnp.sum(partials[:, 0])
    total = jnp.sum(partials[:, 1])
    union = total - intersection
    return 1.0 - (intersection + smooth) / (union + smooth)


def iou_loss_ref(inputs, targets, smooth=1.0):
    x = jnp.reshape(inputs, (-1,)).astype(jnp.float32)
    y = jnp.reshape(targets, (-1,)).astype(jnp.float32)
    intersection = jnp.sum(x * y)
    total = jnp.sum(x + y)
    union = total - intersection
    return 1.0 - (intersection + smooth) / (union + smooth)


if __name__ == "__main__":
    key = jax.random.PRNGKey(0)
    k1, k2, k3, k4, k5, k6 = jax.random.split(key, 6)

    # 1) Small NCHW case (whole-block path), the module's nominal shape.
    inputs = jax.nn.sigmoid(jax.random.normal(k1, (2, 4, 16, 16), jnp.float32))
    targets = (jax.random.uniform(k2, (2, 4, 16, 16)) > 0.5).astype(jnp.float32)
    loss = iou_loss(inputs, targets, smooth=1.0)
    jax.block_until_ready(loss)
    ref = iou_loss_ref(inputs, targets, smooth=1.0)
    assert jnp.allclose(loss, ref, atol=1e-5, rtol=1e-5), (loss, ref)

    # 2) Mid case: lane pad (n % 128 != 0), dual split, one full fast-path
    #    block plus one masked ragged-tail block.
    inputs2 = jax.nn.sigmoid(jax.random.normal(k3, (2, 3, 231, 231), jnp.float32))
    targets2 = (jax.random.uniform(k4, (2, 3, 231, 231)) > 0.5).astype(jnp.float32)
    loss2 = iou_loss(inputs2, targets2, smooth=1.0)
    jax.block_until_ready(loss2)
    ref2 = iou_loss_ref(inputs2, targets2, smooth=1.0)
    assert jnp.allclose(loss2, ref2, atol=2e-5, rtol=1e-4), (loss2, ref2)

    # 3) Larger streaming case: multiple blocks per core (grid (2, 2)), full
    #    fast-path blocks plus a masked tail block.
    inputs3 = jax.nn.sigmoid(jax.random.normal(k5, (8, 4, 256, 257), jnp.float32))
    targets3 = (jax.random.uniform(k6, (8, 4, 256, 257)) > 0.5).astype(jnp.float32)
    loss3 = iou_loss(inputs3, targets3, smooth=1.0)
    jax.block_until_ready(loss3)
    ref3 = iou_loss_ref(inputs3, targets3, smooth=1.0)
    assert jnp.allclose(loss3, ref3, atol=2e-5, rtol=1e-4), (loss3, ref3)

    print("KERNEL_OK")
</pallas_src>

<mosaic_0001>
module attributes {stable_mosaic.version = 11 : i64} {
  func.func @_iou_partials_kernel(%arg0: i32, %arg1: i32, %arg2: memref<16x128xf32, #tpu.memory_space<vmem>>, %arg3: memref<16x128xf32, #tpu.memory_space<vmem>>, %arg4: memref<1x2x8x128xf32, #tpu.memory_space<vmem>>, %arg5: memref<8x128xf32, #tpu.memory_space<vmem>>, %arg6: memref<8x128xf32, #tpu.memory_space<vmem>>) attributes {dimension_semantics = [#tpu.dimension_semantics<parallel>, #tpu.dimension_semantics<arbitrary>], iteration_bounds = array<i64: 1, 1>, scalar_prefetch = 0 : i64, scratch_operands = 2 : i64, tpu.core_type = #tpu.core_type<tc>, window_params = [{transform_indices = @transform_0, window_bounds = array<i64: 16, 128>}, {transform_indices = @transform_1, window_bounds = array<i64: 16, 128>}, {transform_indices = @transform_2, window_bounds = array<i64: 1, 2, 8, 128>}]} {
    %c0_i32 = arith.constant 0 : i32
    %0 = arith.cmpi eq, %arg1, %c0_i32 : i32
    %1 = arith.extui %0 : i1 to i32
    %c0_i32_0 = arith.constant 0 : i32
    %2 = arith.cmpi ne, %1, %c0_i32_0 : i32
    scf.if %2 {
      %cst_15 = arith.constant 0.000000e+00 : f32
      %20 = vector.broadcast %cst_15 : f32 to vector<8x128xf32>
      %c0_16 = arith.constant 0 : index
      %c0_17 = arith.constant 0 : index
      %21 = vector.load %arg5[%c0_16, %c0_17] : memref<8x128xf32, #tpu.memory_space<vmem>>, vector<8x128xf32>
      tpu.vector_store %arg5[%c0_16, %c0_17], %20 {strides = array<i32>} : memref<8x128xf32, #tpu.memory_space<vmem>>, vector<8x128xf32>,
      %cst_18 = arith.constant 0.000000e+00 : f32
      %22 = vector.broadcast %cst_18 : f32 to vector<8x128xf32>
      %c0_19 = arith.constant 0 : index
      %c0_20 = arith.constant 0 : index
      %23 = vector.load %arg6[%c0_19, %c0_20] : memref<8x128xf32, #tpu.memory_space<vmem>>, vector<8x128xf32>
      tpu.vector_store %arg6[%c0_19, %c0_20], %22 {strides = array<i32>} : memref<8x128xf32, #tpu.memory_space<vmem>>, vector<8x128xf32>,
    } else {
    }
    %c0 = arith.constant 0 : index
    %c0_1 = arith.constant 0 : index
    %3 = vector.load %arg2[%c0, %c0_1] : memref<16x128xf32, #tpu.memory_space<vmem>>, vector<16x128xf32>
    %c0_2 = arith.constant 0 : index
    %c0_3 = arith.constant 0 : index
    %4 = vector.load %arg3[%c0_2, %c0_3] : memref<16x128xf32, #tpu.memory_space<vmem>>, vector<16x128xf32>
    %c0_4 = arith.constant 0 : index
    %c0_5 = arith.constant 0 : index
    %5 = vector.load %arg5[%c0_4, %c0_5] : memref<8x128xf32, #tpu.memory_space<vmem>>, vector<8x128xf32>
    %6 = arith.mulf %3, %4 : vector<16x128xf32>
    %7 = vector.shape_cast %6 : vector<16x128xf32> to vector<2x8x128xf32>
    %cst = arith.constant dense<0.000000e+00> : vector<8x128xf32>
    %8 = vector.multi_reduction <add>, %7, %cst [0] : vector<2x8x128xf32> to vector<8x128xf32>
    %9 = arith.addf %5, %8 : vector<8x128xf32>
    %c0_6 = arith.constant 0 : index
    %c0_7 = arith.constant 0 : index
    %10 = vector.load %arg5[%c0_6, %c0_7] : memref<8x128xf32, #tpu.memory_space<vmem>>, vector<8x128xf32>
    tpu.vector_store %arg5[%c0_6, %c0_7], %9 {strides = array<i32>} : memref<8x128xf32, #tpu.memory_space<vmem>>, vector<8x128xf32>,
    %c0_8 = arith.constant 0 : index
    %c0_9 = arith.constant 0 : index
    %11 = vector.load %arg6[%c0_8, %c0_9] : memref<8x128xf32, #tpu.memory_space<vmem>>, vector<8x128xf32>
    %12 = arith.addf %3, %4 : vector<16x128xf32>
    %13 = vector.shape_cast %12 : vector<16x128xf32> to vector<2x8x128xf32>
    %cst_10 = arith.constant dense<0.000000e+00> : vector<8x128xf32>
    %14 = vector.multi_reduction <add>, %13, %cst_10 [0] : vector<2x8x128xf32> to vector<8x128xf32>
    %15 = arith.addf %11, %14 : vector<8x128xf32>
    %c0_11 = arith.constant 0 : index
    %c0_12 = arith.constant 0 : index
    %16 = vector.load %arg6[%c0_11, %c0_12] : memref<8x128xf32, #tpu.memory_space<vmem>>, vector<8x128xf32>
    tpu.vector_store %arg6[%c0_11, %c0_12], %15 {strides = array<i32>} : memref<8x128xf32, #tpu.memory_space<vmem>>, vector<8x128xf32>,
    %c0_i32_13 = arith.constant 0 : i32
    %17 = arith.cmpi eq, %arg1, %c0_i32_13 : i32
    %18 = arith.extui %17 : i1 to i32
    %c0_i32_14 = arith.constant 0 : i32
    %19 = arith.cmpi ne, %18, %c0_i32_14 : i32
    scf.if %19 {
      %c0_15 = arith.constant 0 : index
      %c0_16 = arith.constant 0 : index
      %20 = vector.load %arg5[%c0_15, %c0_16] : memref<8x128xf32, #tpu.memory_space<vmem>>, vector<8x128xf32>
      %c0_17 = arith.constant 0 : index
      %c0_18 = arith.constant 0 : index
      %c0_19 = arith.constant 0 : index
      %c0_20 = arith.constant 0 : index
      %21 = vector.load %arg4[%c0_17, %c0_18, %c0_19, %c0_20] : memref<1x2x8x128xf32, #tpu.memory_space<vmem>>, vector<1x1x8x128xf32>
      %22 = vector.shape_cast %21 : vector<1x1x8x128xf32> to vector<8x128xf32>
      %23 = vector.shape_cast %20 : vector<8x128xf32> to vector<1x1x8x128xf32>
      tpu.vector_store %arg4[%c0_17, %c0_18, %c0_19, %c0_20], %23 {strides = array<i32>} : memref<1x2x8x128xf32, #tpu.memory_space<vmem>>, vector<1x1x8x128xf32>,
      %c0_21 = arith.constant 0 : index
      %c0_22 = arith.constant 0 : index
      %24 = vector.load %arg6[%c0_21, %c0_22] : memref<8x128xf32, #tpu.memory_space<vmem>>, vector<8x128xf32>
      %c0_23 = arith.constant 0 : index
      %c1 = arith.constant 1 : index
      %c0_24 = arith.constant 0 : index
      %c0_25 = arith.constant 0 : index
      %25 = vector.load %arg4[%c0_23, %c1, %c0_24, %c0_25] : memref<1x2x8x128xf32, #tpu.memory_space<vmem>>, vector<1x1x8x128xf32>
      %26 = vector.shape_cast %25 : vector<1x1x8x128xf32> to vector<8x128xf32>
      %27 = vector.shape_cast %24 : vector<8x128xf32> to vector<1x1x8x128xf32>
      tpu.vector_store %arg4[%c0_23, %c1, %c0_24, %c0_25], %27 {strides = array<i32>} : memref<1x2x8x128xf32, #tpu.memory_space<vmem>>, vector<1x1x8x128xf32>,
    } else {
    }
    return
  }
  func.func @transform_0(%arg0: i32, %arg1: i32) -> (i32, i32) {
    %c1_i32 = arith.constant 1 : i32
    %0 = arith.muli %arg0, %c1_i32 : i32
    %1 = arith.addi %0, %arg1 : i32
    %c0_i32 = arith.constant 0 : i32
    %c0_i32_0 = arith.constant 0 : i32
    return %1, %c0_i32 : i32, i32
  }
  func.func @transform_1(%arg0: i32, %arg1: i32) -> (i32, i32) {
    %c1_i32 = arith.constant 1 : i32
    %0 = arith.muli %arg0, %c1_i32 : i32
    %1 = arith.addi %0, %arg1 : i32
    %c0_i32 = arith.constant 0 : i32
    %c0_i32_0 = arith.constant 0 : i32
    return %1, %c0_i32 : i32, i32
  }
  func.func @transform_2(%arg0: i32, %arg1: i32) -> (i32, i32, i32, i32) {
    %c0_i32 = arith.constant 0 : i32
    %c0_i32_0 = arith.constant 0 : i32
    %c0_i32_1 = arith.constant 0 : i32
    %c0_i32_2 = arith.constant 0 : i32
    return %arg0, %c0_i32, %c0_i32_0, %c0_i32_1 : i32, i32, i32, i32
  }
}

</mosaic_0001>

<llo_original>
// kernel: tpu_custom_call.1
$region0: #{tpu_custom_call.1}
  #allocation0 [shape = 'u32[]', space=smem, size = 0x4, offset = 0x4, fixed_abs, tag = 'smem constant byte address 0x4 - core index']
  #allocation1 [shape = 'u32[72,128]{1,0:T(1,128)}', space=vmem, size = 0x9000, scoped, tag = 'internal scratch']
  #allocation2 [shape = 'f32[8,128]{1,0:T(8,128)}', space=vmem, size = 0x1000, scoped, tag = 'scratch operand']
  #allocation3 [shape = 'f32[8,128]{1,0:T(8,128)}', space=vmem, size = 0x1000, scoped, tag = 'scratch operand']
  %s0 = inlined_call_operand.hbm [shape: f32[16,128], index: 0, kind: input, shape index: {}]
  %s1 = inlined_call_operand.hbm [shape: f32[16,128], index: 1, kind: input, shape index: {}]
  %s2 = inlined_call_operand.hbm [shape: f32[1,2,8,128], index: 2, kind: output, shape index: {}]
  %s3 = sld [smem:[#allocation0]]
  $region34: #{tpu_custom_call.1} parent=0
    _
  %s5 = ssub.s32 1, %s3
  %s6 = scalar_select 0, %s5, %s3
  $region1: #{tpu_custom_call.1} parent=0
    #allocation4 [shape = 'u8[8192]{0}', space=vmem, size = 0x2000, scoped, tag = 'input window, operand 0, single buffered']
    #allocation5 [shape = 's32[1]{0}', space=sflag, size = 0x4, scoped, tag = 'scoped memory for tpu_custom_call.1']
    #allocation6 [shape = 's32[1]{0}', space=sflag, size = 0x4, scoped, tag = 'scoped memory for tpu_custom_call.1']
    #allocation7 [shape = 'u8[8192]{0}', space=vmem, size = 0x2000, scoped, tag = 'input window, operand 1, single buffered']
    #allocation8 [shape = 's32[1]{0}', space=sflag, size = 0x4, scoped, tag = 'scoped memory for tpu_custom_call.1']
    #allocation9 [shape = 'u8[8192]{0}', space=vmem, size = 0x2000, scoped, tag = 'output window, operand 0, single buffered']
    %7 = vsyncpa [#allocation5], 0
    %8 = vsyncpa [#allocation8], 0
    %9 = vsyncpa [#allocation6], 0
    // Predicated region
    $region2: #{tpu_custom_call.1} parent=1 // pred_check
      _
    $region3: #{tpu_custom_call.1} parent=1 // pred_check_branch
      %11 = sbr.rel (0) target = $region5
    $region4: #{tpu_custom_call.1} parent=1 // pred_region
      %s12 = sadd.s32 0, 0
      %s13 = smul.u32 2, %s12
      %15 = vsyncadd [#allocation5], 0
      %s16 = smul.addr %s13, 8
      %s17 = scalar_lea.hbm %s0, %s16
      %s18 = sshll.u32 %s17, 4
      %s19 = int_to_ptr.hbm [resolvable:$true] %s18
      %s20 = sshll.u32 [#allocation4], 4
      %s21 = int_to_ptr.vmem [resolvable:$true] %s20
      %26 = dma.hbm_to_vmem [thread:$0]  %s19, 256, %s21, [#allocation5], 128, 128, 8
    $region5: #{tpu_custom_call.1} parent=1 // pred_fallthru
      _
    // Predicated region
    $region6: #{tpu_custom_call.1} parent=1 // pred_check
      _
    $region7: #{tpu_custom_call.1} parent=1 // pred_check_branch
      %28 = sbr.rel (0) target = $region9
    $region8: #{tpu_custom_call.1} parent=1 // pred_region
      %s29 = sadd.s32 0, 0
      %s30 = smul.u32 2, %s29
      %32 = vsyncadd [#allocation8], 0
      %s33 = smul.addr %s30, 8
      %s34 = scalar_lea.hbm %s1, %s33
      %s35 = sshll.u32 %s34, 4
      %s36 = int_to_ptr.hbm [resolvable:$true] %s35
      %s37 = sshll.u32 [#allocation7], 4
      %s38 = int_to_ptr.vmem [resolvable:$true] %s37
      %43 = dma.hbm_to_vmem [thread:$0]  %s36, 256, %s38, [#allocation8], 128, 128, 8
    $region9: #{tpu_custom_call.1} parent=1 // pred_fallthru
      _
    // Predicated region
    $region10: #{tpu_custom_call.1} parent=1 // pred_check
      _
    $region11: #{tpu_custom_call.1} parent=1 // pred_check_branch
      %45 = sbr.rel (0) target = $region13
    $region12: #{tpu_custom_call.1} parent=1 // pred_region
      %47 = dma.done [#allocation5], 256
    $region13: #{tpu_custom_call.1} parent=1 // pred_fallthru
      _
    // Predicated region
    $region14: #{tpu_custom_call.1} parent=1 // pred_check
      _
    $region15: #{tpu_custom_call.1} parent=1 // pred_check_branch
      %49 = sbr.rel (0) target = $region17
    $region16: #{tpu_custom_call.1} parent=1 // pred_region
      %51 = dma.done [#allocation8], 256
    $region17: #{tpu_custom_call.1} parent=1 // pred_fallthru
      _
    %s52 = sadd.s32 0, 0
    %s53 = smul.u32 2, %s52
    %s54 = sadd.s32 0, 0
    %s55 = smul.u32 2, %s54
    %p56 = scmp.eq.s32.totalorder 0, 0
    // Predicated region
    $region18: #{tpu_custom_call.1} parent=1 // pred_check
      %p57 = pneg %p56
    $region19: #{tpu_custom_call.1} parent=1 // pred_check_branch
      %59 = sbr.rel (%p57) target = $region21
    $region20: #{tpu_custom_call.1} parent=1 // pred_region
      %60 = vst [vmem:[#allocation2] sm:$0xff] 0.0
      %61 = vst [vmem:[#allocation3] sm:$0xff] 0.0
    $region21: #{tpu_custom_call.1} parent=1 // pred_fallthru
      _
    %v62 = vld [vmem:[#allocation4] sm:$0xff]
    %v63 = vld [vmem:[#allocation4 + $0x8] sm:$0xff]
    %v64 = vld [vmem:[#allocation7] sm:$0xff]
    %v65 = vld [vmem:[#allocation7 + $0x8] sm:$0xff]
    %v66 = vld [vmem:[#allocation2] sm:$0xff]
    %v67 = vmul.f32 %v62, %v64
    %v68 = vmul.f32 %v63, %v65
    %v69 = vadd.f32 %v67, %v68
    %v70 = vadd.f32 %v66, %v69
    %71 = vst [vmem:[#allocation2] sm:$0xff] %v70
    %v72 = vld [vmem:[#allocation3] sm:$0xff]
    %v73 = vadd.f32 %v62, %v64
    %v74 = vadd.f32 %v63, %v65
    %v75 = vadd.f32 %v73, %v74
    %v76 = vadd.f32 %v72, %v75
    %77 = vst [vmem:[#allocation3] sm:$0xff] %v76
    // Predicated region
    $region22: #{tpu_custom_call.1} parent=1 // pred_check
      %p78 = pneg %p56
    $region23: #{tpu_custom_call.1} parent=1 // pred_check_branch
      %80 = sbr.rel (%p78) target = $region25
    $region24: #{tpu_custom_call.1} parent=1 // pred_region
      %v81 = vld [vmem:[#allocation2] sm:$0xff]
      %82 = vst [vmem:[#allocation9] sm:$0xff] %v81
      %v83 = vld [vmem:[#allocation3] sm:$0xff]
      %s84 = scalar_lea.vmem [#allocation9], 8
      %85 = vst [vmem:[%s84] sm:$0xff] %v83
    $region25: #{tpu_custom_call.1} parent=1 // pred_fallthru
      _
    // Predicated region
    $region26: #{tpu_custom_call.1} parent=1 // pred_check
      _
    $region27: #{tpu_custom_call.1} parent=1 // pred_check_branch
      %87 = sbr.rel (0) target = $region29
    $region28: #{tpu_custom_call.1} parent=1 // pred_region
      %89 = vsyncadd [#allocation6], 0
      %s90 = sshll.u32 [#allocation9], 4
      %s91 = int_to_ptr.vmem [resolvable:$true] %s90
      %s92 = sshll.u32 %s2, 4
      %s93 = int_to_ptr.hbm [resolvable:$true] %s92
      %98 = dma.vmem_to_hbm [thread:$0]  %s91, 256, %s93, [#allocation6], 128, 128, 8
    $region29: #{tpu_custom_call.1} parent=1 // pred_fallthru
      _
    // Predicated region
    $region30: #{tpu_custom_call.1} parent=1 // pred_check
      _
    $region31: #{tpu_custom_call.1} parent=1 // pred_check_branch
      %100 = sbr.rel (0) target = $region33
    $region32: #{tpu_custom_call.1} parent=1 // pred_region
      %102 = dma.done [#allocation6], 256
    $region33: #{tpu_custom_call.1} parent=1 // pred_fallthru
      _
    %103 = vsyncpa [#allocation5], 1
    %104 = vsyncpa [#allocation8], 1
    %105 = vsyncpa [#allocation6], 1

</llo_original>
